<compile_context>
chip_gen: v7x
topology: tpu7x:2x2x1
jax: 0.10.0
libtpu: 0.0.40
codegen_flags: <defaults>
</compile_context>

<pallas_src>
import jax
import jax.numpy as jnp
import numpy as np
from jax import lax
from jax.experimental import pallas as pl
from jax.experimental.pallas import tpu as pltpu

# ---- problem sizes (from the PyTorch module) --------------------------------
N, C_IN, H, W = 2, 2, 8, 8
C_OUT, KH, KW = 3, 7, 7
STRIDE = 2
OH = (H - 1) * STRIDE + KH          # 21
OW = (W - 1) * STRIDE + KW          # 21

# ---- polyphase / layout constants --------------------------------------------
PAD = (KH - 1) // 2                 # 3   max tap shift per phase
HP = H + 2 * PAD                    # 14  padded input height
WP = W + 2 * PAD                    # 14  padded input width == flat row stride
NA = PAD + 1                        # 4   taps per axis (parity 0; parity 1 uses 3)
QH = (OH + 1) // 2                  # 11  per-phase output rows/cols (phase-1 row 10 is cropped)
L = 256                             # flat per-phase output length (2 full lane tiles)
LANES = N * L                       # 512 kernel output lanes = (n, flat)
FLAT = PAD * WP + PAD + L           # 301 padded flat input length (max window offset 45 + L)
K_ROWS = NA * NA * C_IN             # 32  matmul contraction rows: (a, b, c)
M_ROWS = 4 * C_OUT                  # 12  matmul output rows: (phase, o)
M_PAD = 16                          # padded to 2 sublane tiles


def convt_tanh_kernel(x_ref, w_ref, b_ref, o_ref):
    # x_ref: (32, 512)  shifted-window matrix, rows=(a,b,c), lanes=(n, flat)
    # w_ref: (16, 32)   per-(phase, o) tap rows (zeros for excluded taps / pad rows)
    # b_ref: (16, 1)    bias column per (phase, o) row
    # o_ref: (16, 512)  tanh(conv_transpose) for all 4 phases, flat spatial on lanes
    acc = jnp.dot(w_ref[...], x_ref[...],
                  preferred_element_type=jnp.float32,
                  precision=jax.lax.Precision.HIGHEST)
    o_ref[...] = jnp.tanh(acc + b_ref[...])


@jax.jit
def conv_transpose_tanh(x, w_t, b):
    """x: (N, C_IN, H, W); w_t: (C_IN, C_OUT, KH, KW) PyTorch layout; b: (C_OUT,)."""
    dt = jnp.float32

    # --- X: pad spatially, flatten with row stride WP, take the 16 shifted windows ----------
    x_p = jnp.pad(x.astype(dt), ((0, 0), (0, 0), (PAD, PAD), (PAD, PAD)))     # (N, C_IN, 14, 14)
    x_f = jnp.pad(x_p.reshape(N, C_IN, HP * WP),
                  ((0, 0), (0, 0), (0, FLAT - HP * WP)))                      # (N, C_IN, 301)
    offs = [a * WP + b_ for a in range(NA) for b_ in range(NA)]
    wins = jnp.stack([x_f[:, :, o:o + L] for o in offs], axis=0)              # (16, N, C_IN, L)
    x_mat = jnp.transpose(wins, (0, 2, 1, 3)).reshape(K_ROWS, LANES)          # (32, 512)

    # --- W: tap (a, b) of phase (ph, pw) is w_t[c, o, 2*(PAD-a)+ph, 2*(PAD-b)+pw]; the zero
    #        pad row/col 7 realizes the excluded (a=0, ph=1) / (b=0, pw=1) taps exactly. ------
    w_p = jnp.pad(w_t.astype(dt), ((0, 0), (0, 0), (0, 1), (0, 1)))           # (C_IN, C_OUT, 8, 8)
    w6 = w_p.reshape(C_IN, C_OUT, NA, 2, NA, 2)[:, :, ::-1, :, ::-1, :]       # [c,o,a,ph,b,pw]
    w_mat = jnp.transpose(w6, (3, 5, 1, 2, 4, 0)).reshape(M_ROWS, K_ROWS)     # [(ph,pw,o),(a,b,c)]
    w_mat = jnp.pad(w_mat, ((0, M_PAD - M_ROWS), (0, 0)))                     # (16, 32)

    # --- bias column per (phase, o) row -------------------------------------------------------
    b_col = jnp.pad(jnp.tile(b.astype(dt), 4), (0, M_PAD - M_ROWS))[:, None]  # (16, 1)

    out_k = pl.pallas_call(
        convt_tanh_kernel,
        out_shape=jax.ShapeDtypeStruct((M_PAD, LANES), jnp.float32),
        in_specs=[
            pl.BlockSpec(memory_space=pltpu.MemorySpace.VMEM),   # X (32, 512)
            pl.BlockSpec(memory_space=pltpu.MemorySpace.VMEM),   # W (16, 32)
            pl.BlockSpec(memory_space=pltpu.MemorySpace.VMEM),   # bias (16, 1)
        ],
        out_specs=pl.BlockSpec(memory_space=pltpu.MemorySpace.VMEM),
    )(x_mat, w_mat, b_col)

    # --- single interleave: unflatten, stack phases, ONE transpose+reshape+crop --------------
    out = out_k[:M_ROWS].reshape(4, C_OUT, N, L)[..., :QH * WP]               # [p, o, n, qh*WP+qw]
    out = out.reshape(4, C_OUT, N, QH, WP)[..., :QH]                          # (4, C_OUT, N, 11, 11)
    out = out.reshape(2, 2, C_OUT, N, QH, QH)                                 # [ph, pw, o, n, qh, qw]
    y = jnp.transpose(out, (3, 2, 4, 0, 5, 1)).reshape(N, C_OUT, 2 * QH, 2 * QH)
    return y[:, :, :OH, :OW]


if __name__ == "__main__":
    key = jax.random.PRNGKey(0)
    kx, kw, kb = jax.random.split(key, 3)

    # Deterministic parameter init (PyTorch-style uniform bound for ConvTranspose2d)
    fan_in = C_OUT * KH * KW
    bound = 1.0 / np.sqrt(fan_in)
    w_t = jax.random.uniform(kw, (C_IN, C_OUT, KH, KW), jnp.float32, -bound, bound)
    b = jax.random.uniform(kb, (C_OUT,), jnp.float32, -bound, bound)
    x = jax.random.normal(kx, (N, C_IN, H, W), jnp.float32)

    out = jax.block_until_ready(conv_transpose_tanh(x, w_t, b))
    assert out.shape == (N, C_OUT, OH, OW), out.shape

    # Reference: float64 NumPy ConvTranspose2d + bias + tanh (no device precision effects).
    xn = np.asarray(x, np.float64)
    wn = np.asarray(w_t, np.float64)
    bn = np.asarray(b, np.float64)
    contrib = np.einsum("ncij,cokl->noijkl", xn, wn)          # (N, C_OUT, H, W, KH, KW)
    ref = np.zeros((N, C_OUT, OH, OW), np.float64)
    for kh in range(KH):
        for kw_ in range(KW):
            ref[:, :, kh:kh + STRIDE * H:STRIDE, kw_:kw_ + STRIDE * W:STRIDE] += contrib[..., kh, kw_]
    ref = np.tanh(ref + bn[None, :, None, None])

    np.testing.assert_allclose(np.asarray(out), ref, rtol=1e-4, atol=1e-4)
    print("KERNEL_OK")
</pallas_src>

<mosaic_0001>
module attributes {stable_mosaic.version = 11 : i64} {
  func.func @convt_tanh_kernel(%arg0: memref<32x512xf32, #tpu.memory_space<vmem>>, %arg1: memref<16x32xf32, #tpu.memory_space<vmem>>, %arg2: memref<16x1xf32, #tpu.memory_space<vmem>>, %arg3: memref<16x512xf32, #tpu.memory_space<vmem>>) attributes {dimension_semantics = [], scalar_prefetch = 0 : i64, scratch_operands = 0 : i64, tpu.core_type = #tpu.core_type<tc>} {
    %c0 = arith.constant 0 : index
    %c0_0 = arith.constant 0 : index
    %0 = vector.load %arg1[%c0, %c0_0] : memref<16x32xf32, #tpu.memory_space<vmem>>, vector<16x32xf32>
    %c0_1 = arith.constant 0 : index
    %c0_2 = arith.constant 0 : index
    %1 = vector.load %arg0[%c0_1, %c0_2] : memref<32x512xf32, #tpu.memory_space<vmem>>, vector<32x512xf32>
    %cst = arith.constant dense<0.000000e+00> : vector<16x512xf32>
    %2 = tpu.matmul %0, %1, %cst {dimension_numbers = #tpu.dot_dimension_numbers<[1], [0], [0], [1], [0, 0, 1, 1], [], []>, precision = #tpu.contract_precision<fp32>} : vector<16x32xf32>, vector<32x512xf32>, vector<16x512xf32> -> vector<16x512xf32>
    %c0_3 = arith.constant 0 : index
    %c0_4 = arith.constant 0 : index
    %3 = vector.load %arg2[%c0_3, %c0_4] : memref<16x1xf32, #tpu.memory_space<vmem>>, vector<16x1xf32>
    %4 = vector.broadcast %3 : vector<16x1xf32> to vector<16x512xf32>
    %5 = arith.addf %2, %4 : vector<16x512xf32>
    %6 = math.tanh %5 : vector<16x512xf32>
    %c0_5 = arith.constant 0 : index
    %c0_6 = arith.constant 0 : index
    %7 = vector.load %arg3[%c0_5, %c0_6] : memref<16x512xf32, #tpu.memory_space<vmem>>, vector<16x512xf32>
    tpu.vector_store %arg3[%c0_5, %c0_6], %6 {strides = array<i32>} : memref<16x512xf32, #tpu.memory_space<vmem>>, vector<16x512xf32>,
    return
  }
}

</mosaic_0001>

<llo_original>
// kernel: tile.8
$region0: #{tile.8}
  #allocation0 [shape = 's32[1]{0}', space=sflag, size = 0x4, scoped, tag = 'scoped memory for tile.8']
  %s0 = inlined_call_operand.vmem [shape: f32[3], index: 0, kind: input, shape index: {}]
  %s1 = inlined_call_operand.vmem [shape: f32[4,3], index: 1, kind: output, shape index: {}]
  // Predicated region
  $region2: #{tile.8} parent=0 // pred_check
    _
  $region3: #{tile.8} parent=0 // pred_check_branch
    %3 = sbr.rel (0) target = $region5
  $region4: #{tile.8} parent=0 // pred_region
    _
  $region5: #{tile.8} parent=0 // pred_fallthru
    _
  %v4 = vld [vmem:[%s0] ss:$0 sm:$0xff]
  %5 = vst [vmem:[%s1] sm:$0xf] %v4

// kernel: tile.9
$region0: #{tile.9}
  %s0 = inlined_call_operand.vmem [shape: f32[4,3], index: 0, kind: input, shape index: {}]
  %s1 = inlined_call_operand.vmem [shape: f32[12], index: 1, kind: output, shape index: {}]
  $region1: #{tile.9} parent=0
    #allocation0 [shape = 'u8[4096]{0}', space=vmem, size = 0x1000, scoped, tag = 'scoped mem for output reshape']
    #allocation1 [shape = 'u8[4096]{0}', space=vmem, size = 0x1000, scoped, tag = 'scoped mem for input reshape']
    %s3 = sshllo.u32 0, 4
    %v4 = vld [vmem:[%s0] sm:%s3]
    %5 = vst [vmem:[#allocation1] sm:%s3] %v4
    %v6 = vld [vmem:[#allocation1] sm:$0x1]
    %vm7 = vcmask 23552
    %8 = vst.msk [vmem:[#allocation0] sm:$0x1] %vm7, %v6
    %s9 = scalar_lea.vmem [#allocation1], 3
    %v10 = vld [vmem:[%s9] sm:$0x1]
    %11 = vrot.lane.b32.xlu0 %v10, 9
    %v12 = vpop.permute.xlu0 %11
    %vm13 = vcmask 97352
    %14 = vst.msk [vmem:[#allocation0] sm:$0x1] %vm13, %v12
    %s15 = scalar_lea.vmem [#allocation1], 2
    %v16 = vld [vmem:[%s15] sm:$0x1]
    %17 = vrot.lane.b32.xlu0 %v16, 6
    %v18 = vpop.permute.xlu0 %17
    %vm19 = vcmask 72752
    %20 = vst.msk [vmem:[#allocation0] sm:$0x1] %vm19, %v18
    %s21 = scalar_lea.vmem [#allocation1], 1
    %v22 = vld [vmem:[%s21] sm:$0x1]
    %23 = vrot.lane.b32.xlu0 %v22, 3
    %v24 = vpop.permute.xlu0 %23
    %vm25 = vcmask 48152
    %26 = vst.msk [vmem:[#allocation0] sm:$0x1] %vm25, %v24
    %s28 = sshllo.u32 0, 1
    %v30 = vld [vmem:[#allocation0] sm:%s28]
    %s31 = sshllo.u32 0, 1
    %32 = vst [vmem:[%s1] sm:%s31] %v30

// kernel: conv_transpose_tanh.1
$region0: #{conv_transpose_tanh.1}
  #allocation0 [shape = 'u32[]', space=smem, size = 0x4, offset = 0x4, fixed_abs, tag = 'smem constant byte address 0x4 - core index']
  #allocation1 [shape = 'u32[144,128]{1,0:T(1,128)}', space=vmem, size = 0x12000, scoped, tag = 'internal scratch']
  %s0 = inlined_call_operand.vmem [shape: f32[32,512], index: 0, kind: input, shape index: {}]
  %s1 = inlined_call_operand.vmem [shape: f32[16,32], index: 1, kind: input, shape index: {}]
  %s2 = inlined_call_operand.vmem [shape: f32[16,1], index: 2, kind: input, shape index: {}]
  %s3 = inlined_call_operand.vmem [shape: f32[16,512], index: 3, kind: output, shape index: {}]
  %s4 = sld [smem:[#allocation0]]
  $region22: #{conv_transpose_tanh.1} parent=0
    _
  %s6 = ssub.s32 1, %s4
  %s7 = scalar_select 0, %s6, %s4
  // Predicated region
  $region2: #{conv_transpose_tanh.1} parent=0 // pred_check
    _
  $region3: #{conv_transpose_tanh.1} parent=0 // pred_check_branch
    %9 = sbr.rel (0) target = $region5
  $region4: #{conv_transpose_tanh.1} parent=0 // pred_region
    _
  $region5: #{conv_transpose_tanh.1} parent=0 // pred_fallthru
    _
  // Predicated region
  $region6: #{conv_transpose_tanh.1} parent=0 // pred_check
    _
  $region7: #{conv_transpose_tanh.1} parent=0 // pred_check_branch
    %11 = sbr.rel (0) target = $region9
  $region8: #{conv_transpose_tanh.1} parent=0 // pred_region
    _
  $region9: #{conv_transpose_tanh.1} parent=0 // pred_fallthru
    _
  // Predicated region
  $region10: #{conv_transpose_tanh.1} parent=0 // pred_check
    _
  $region11: #{conv_transpose_tanh.1} parent=0 // pred_check_branch
    %13 = sbr.rel (0) target = $region13
  $region12: #{conv_transpose_tanh.1} parent=0 // pred_region
    _
  $region13: #{conv_transpose_tanh.1} parent=0 // pred_fallthru
    _
  %v14 = vld [vmem:[%s1] sm:$0xff]
  %v15 = vld [vmem:[%s1 + $0x8] sm:$0xff]
  %v16 = vld [vmem:[%s0] sm:$0xff]
  %v17 = vld [vmem:[%s0 + $0x8] sm:$0xff]
  %v18 = vld [vmem:[%s0 + $0x10] sm:$0xff]
  %v19 = vld [vmem:[%s0 + $0x18] sm:$0xff]
  %v20 = vld [vmem:[%s0 + $0x20] sm:$0xff]
  %v21 = vld [vmem:[%s0 + $0x28] sm:$0xff]
  %v22 = vld [vmem:[%s0 + $0x30] sm:$0xff]
  %v23 = vld [vmem:[%s0 + $0x38] sm:$0xff]
  %v24 = vld [vmem:[%s0 + $0x40] sm:$0xff]
  %v25 = vld [vmem:[%s0 + $0x48] sm:$0xff]
  %v26 = vld [vmem:[%s0 + $0x50] sm:$0xff]
  %v27 = vld [vmem:[%s0 + $0x58] sm:$0xff]
  %v28 = vld [vmem:[%s0 + $0x60] sm:$0xff]
  %v29 = vld [vmem:[%s0 + $0x68] sm:$0xff]
  %v30 = vld [vmem:[%s0 + $0x70] sm:$0xff]
  %v31 = vld [vmem:[%s0 + $0x78] sm:$0xff]
  %v32 = vld [vmem:[%s2] sm:$0xff]
  %v33 = vld [vmem:[%s2 + $0x8] sm:$0xff]
  %35 = vset.pattern.permute.xlu0 0
  %36 = vperm.xlu0 %35, %v32
  %v37 = vpop.permute.xlu0 %36
  %40 = vset.pattern.permute.xlu0 0
  %41 = vperm.xlu0 %40, %v33
  %v42 = vpop.permute.xlu0 %41
  %vm44 = vcmask 261120
  %v46 = vsel %vm44, %v14, 0
  %v49 = vsel %vm44, %v15, 0
  %v51 = vand.u32 %v17, 4294901760
  %52 = vmatprep.subr.mxu0 %v51
  %v53 = vand.u32 %v16, 4294901760
  %54 = vmatpush1.msra.mxu0 %v53
  %v55 = vand.u32 %v21, 4294901760
  %56 = vmatprep.subr.mxu0 %v55
  %v57 = vand.u32 %v20, 4294901760
  %58 = vmatpush1.msra.mxu0 %v57
  %v59 = vand.u32 %v25, 4294901760
  %60 = vmatprep.subr.mxu0 %v59
  %v61 = vand.u32 %v24, 4294901760
  %62 = vmatpush1.msra.mxu0 %v61
  %v63 = vand.u32 %v29, 4294901760
  %64 = vmatprep.subr.mxu0 %v63
  %v65 = vand.u32 %v28, 4294901760
  %66 = vmatpush1.msra.mxu0 %v65
  %67 = vmatprep.subr.mxu0 0.0
  %68 = vmatpush1.msra.mxu0 0.0
  %69 = vmatprep.subr.mxu0 0.0
  %70 = vmatpush1.msra.mxu0 0.0
  %71 = vmatprep.subr.mxu0 0.0
  %72 = vmatpush1.msra.mxu0 0.0
  %73 = vmatprep.subr.mxu0 0.0
  %74 = vmatpush1.msra.mxu0 0.0
  %75 = vmatprep.subr.mxu0 0.0
  %76 = vmatpush1.msra.mxu0 0.0
  %77 = vmatprep.subr.mxu0 0.0
  %78 = vmatpush1.msra.mxu0 0.0
  %79 = vmatprep.subr.mxu0 0.0
  %80 = vmatpush1.msra.mxu0 0.0
  %81 = vmatprep.subr.mxu0 0.0
  %82 = vmatpush1.msra.mxu0 0.0
  %83 = vmatprep.subr.mxu0 0.0
  %84 = vmatpush1.msra.mxu0 0.0
  %85 = vmatprep.subr.mxu0 0.0
  %86 = vmatpush1.msra.mxu0 0.0
  %87 = vmatprep.subr.mxu0 0.0
  %88 = vmatpush1.msra.mxu0 0.0
  %89 = vmatprep.subr.mxu0 0.0
  %90 = vmatpush1.msra.mxu0 0.0
  %91 = vmatprep.subr.mxu0 0.0
  %92 = vmatpush1.msra.mxu0 0.0
  %93 = vmatprep.subr.mxu0 0.0
  %94 = vmatpush1.msra.mxu0 0.0
  %95 = vmatprep.subr.mxu0 0.0
  %96 = vmatpush1.msra.mxu0 0.0
  %97 = vmatprep.subr.mxu0 0.0
  %98 = vmatpush1.msra.mxu0 0.0
  %99 = vmatprep.subr.mxu0 0.0
  %100 = vmatpush1.msra.mxu0 0.0
  %101 = vmatprep.subr.mxu0 0.0
  %102 = vmatpush1.msra.mxu0 0.0
  %103 = vmatprep.subr.mxu0 0.0
  %104 = vmatpush1.msra.mxu0 0.0
  %105 = vmatprep.subr.mxu0 0.0
  %106 = vmatpush1.msra.mxu0 0.0
  %107 = vmatprep.subr.mxu0 0.0
  %108 = vmatpush1.msra.mxu0 0.0
  %109 = vmatprep.subr.mxu0 0.0
  %110 = vmatpush1.msra.mxu0 0.0
  %111 = vmatprep.subr.mxu0 0.0
  %112 = vmatpush1.msra.mxu0 0.0
  %113 = vmatprep.subr.mxu0 0.0
  %114 = vmatpush1.msra.mxu0 0.0
  %115 = vmatprep.subr.mxu0 0.0
  %116 = vmatpush1.msra.mxu0 0.0
  %117 = vmatprep.subr.mxu0 0.0
  %118 = vmatpush1.msra.mxu0 0.0
  %119 = vmatprep.subr.mxu0 0.0
  %120 = vmatpush1.msra.mxu0 0.0
  %121 = vmatprep.subr.mxu0 0.0
  %122 = vmatpush1.msra.mxu0 0.0
  %123 = vmatprep.mubr.f32.mxu0 0.0
  %v124 = vand.u32 %v46, 4294901760
  %v125 = vsub.f32 %v46, %v124
  %v126 = vand.u32 %v125, 4294901760
  %v127 = vsub.f32 %v125, %v126
  %v128 = vand.u32 %v127, 4294901760
  %129 = vmatmul.mubr.f32.gmra.mrb[0].mxu0 %v128
  %v130 = vpop.f32.mrb[0].mxu0
  %v131 = vadd.f32 %v37, %v130
  %v132 = vpop.f32.mrb[0].mxu0
  %v133 = vadd.f32 %v37, %v132
  %134 = vmatprep.mubr.f32.mxu0 0.0
  %v135 = vand.u32 %v49, 4294901760
  %v136 = vsub.f32 %v49, %v135
  %v137 = vand.u32 %v136, 4294901760
  %v138 = vsub.f32 %v136, %v137
  %v139 = vand.u32 %v138, 4294901760
  %140 = vmatmul.mubr.f32.gmra.mrb[0].mxu0 %v139
  %v141 = vpop.f32.mrb[0].mxu0
  %v142 = vadd.f32 %v42, %v141
  %v143 = vpop.f32.mrb[0].mxu0
  %v144 = vadd.f32 %v42, %v143
  %145 = vdwg.mxu0
  %v146 = vand.u32 %v17, 4294901760
  %v147 = vsub.f32 %v17, %v146
  %v148 = vand.u32 %v147, 4294901760
  %v149 = vsub.f32 %v147, %v148
  %v150 = vand.u32 %v149, 4294901760
  %151 = vmatprep.subr.mxu0 %v150
  %v152 = vand.u32 %v16, 4294901760
  %v153 = vsub.f32 %v16, %v152
  %v154 = vand.u32 %v153, 4294901760
  %v155 = vsub.f32 %v153, %v154
  %v156 = vand.u32 %v155, 4294901760
  %157 = vmatpush1.msra.mxu0 %v156
  %v158 = vand.u32 %v21, 4294901760
  %v159 = vsub.f32 %v21, %v158
  %v160 = vand.u32 %v159, 4294901760
  %v161 = vsub.f32 %v159, %v160
  %v162 = vand.u32 %v161, 4294901760
  %163 = vmatprep.subr.mxu0 %v162
  %v164 = vand.u32 %v20, 4294901760
  %v165 = vsub.f32 %v20, %v164
  %v166 = vand.u32 %v165, 4294901760
  %v167 = vsub.f32 %v165, %v166
  %v168 = vand.u32 %v167, 4294901760
  %169 = vmatpush1.msra.mxu0 %v168
  %v170 = vand.u32 %v25, 4294901760
  %v171 = vsub.f32 %v25, %v170
  %v172 = vand.u32 %v171, 4294901760
  %v173 = vsub.f32 %v171, %v172
  %v174 = vand.u32 %v173, 4294901760
  %175 = vmatprep.subr.mxu0 %v174
  %v176 = vand.u32 %v24, 4294901760
  %v177 = vsub.f32 %v24, %v176
  %v178 = vand.u32 %v177, 4294901760
  %v179 = vsub.f32 %v177, %v178
  %v180 = vand.u32 %v179, 4294901760
  %181 = vmatpush1.msra.mxu0 %v180
  %v182 = vand.u32 %v29, 4294901760
  %v183 = vsub.f32 %v29, %v182
  %v184 = vand.u32 %v183, 4294901760
  %v185 = vsub.f32 %v183, %v184
  %v186 = vand.u32 %v185, 4294901760
  %187 = vmatprep.subr.mxu0 %v186
  %v188 = vand.u32 %v28, 4294901760
  %v189 = vsub.f32 %v28, %v188
  %v190 = vand.u32 %v189, 4294901760
  %v191 = vsub.f32 %v189, %v190
  %v192 = vand.u32 %v191, 4294901760
  %193 = vmatpush1.msra.mxu0 %v192
  %194 = vmatprep.subr.mxu0 0.0
  %195 = vmatpush1.msra.mxu0 0.0
  %196 = vmatprep.subr.mxu0 0.0
  %197 = vmatpush1.msra.mxu0 0.0
  %198 = vmatprep.subr.mxu0 0.0
  %199 = vmatpush1.msra.mxu0 0.0
  %200 = vmatprep.subr.mxu0 0.0
  %201 = vmatpush1.msra.mxu0 0.0
  %202 = vmatprep.subr.mxu0 0.0
  %203 = vmatpush1.msra.mxu0 0.0
  %204 = vmatprep.subr.mxu0 0.0
  %205 = vmatpush1.msra.mxu0 0.0
  %206 = vmatprep.subr.mxu0 0.0
  %207 = vmatpush1.msra.mxu0 0.0
  %208 = vmatprep.subr.mxu0 0.0
  %209 = vmatpush1.msra.mxu0 0.0
  %210 = vmatprep.subr.mxu0 0.0
  %211 = vmatpush1.msra.mxu0 0.0
  %212 = vmatprep.subr.mxu0 0.0
  %213 = vmatpush1.msra.mxu0 0.0
  %214 = vmatprep.subr.mxu0 0.0
  %215 = vmatpush1.msra.mxu0 0.0
  %216 = vmatprep.subr.mxu0 0.0
  %217 = vmatpush1.msra.mxu0 0.0
  %218 = vmatprep.subr.mxu0 0.0
  %219 = vmatpush1.msra.mxu0 0.0
  %220 = vmatprep.subr.mxu0 0.0
  %221 = vmatpush1.msra.mxu0 0.0
  %222 = vmatprep.subr.mxu0 0.0
  %223 = vmatpush1.msra.mxu0 0.0
  %224 = vmatprep.subr.mxu0 0.0
  %225 = vmatpush1.msra.mxu0 0.0
  %226 = vmatprep.subr.mxu0 0.0
  %227 = vmatpush1.msra.mxu0 0.0
  %228 = vmatprep.subr.mxu0 0.0
  %229 = vmatpush1.msra.mxu0 0.0
  %230 = vmatprep.subr.mxu0 0.0
  %231 = vmatpush1.msra.mxu0 0.0
  %232 = vmatprep.subr.mxu0 0.0
  %233 = vmatpush1.msra.mxu0 0.0
  %234 = vmatprep.subr.mxu0 0.0
  %235 = vmatpush1.msra.mxu0 0.0
  %236 = vmatprep.subr.mxu0 0.0
  %237 = vmatpush1.msra.mxu0 0.0
  %238 = vmatprep.subr.mxu0 0.0
  %239 = vmatpush1.msra.mxu0 0.0
  %240 = vmatprep.subr.mxu0 0.0
  %241 = vmatpush1.msra.mxu0 0.0
  %242 = vmatprep.subr.mxu0 0.0
  %243 = vmatpush1.msra.mxu0 0.0
  %244 = vmatprep.subr.mxu0 0.0
  %245 = vmatpush1.msra.mxu0 0.0
  %246 = vmatprep.subr.mxu0 0.0
  %247 = vmatpush1.msra.mxu0 0.0
  %248 = vmatprep.subr.mxu0 0.0
  %249 = vmatpush1.msra.mxu0 0.0
  %250 = vmatprep.mubr.f32.mxu0 0.0
  %v251 = vand.u32 %v46, 4294901760
  %252 = vmatmul.mubr.f32.gmra.mrb[0].mxu0 %v251
  %v253 = vpop.f32.mrb[0].mxu0
  %v254 = vadd.f32 %v131, %v253
  %v255 = vpop.f32.mrb[0].mxu0
  %v256 = vadd.f32 %v133, %v255
  %257 = vmatprep.mubr.f32.mxu0 0.0
  %v258 = vand.u32 %v49, 4294901760
  %259 = vmatmul.mubr.f32.gmra.mrb[0].mxu0 %v258
  %v260 = vpop.f32.mrb[0].mxu0
  %v261 = vadd.f32 %v142, %v260
  %v262 = vpop.f32.mrb[0].mxu0
  %v263 = vadd.f32 %v144, %v262
  %264 = vdwg.mxu0
  %v265 = vand.u32 %v17, 4294901760
  %v266 = vsub.f32 %v17, %v265
  %267 = vmatprep.subr.mxu0 %v266
  %v268 = vand.u32 %v16, 4294901760
  %v269 = vsub.f32 %v16, %v268
  %270 = vmatpush1.msra.mxu0 %v269
  %v271 = vand.u32 %v21, 4294901760
  %v272 = vsub.f32 %v21, %v271
  %273 = vmatprep.subr.mxu0 %v272
  %v274 = vand.u32 %v20, 4294901760
  %v275 = vsub.f32 %v20, %v274
  %276 = vmatpush1.msra.mxu0 %v275
  %v277 = vand.u32 %v25, 4294901760
  %v278 = vsub.f32 %v25, %v277
  %279 = vmatprep.subr.mxu0 %v278
  %v280 = vand.u32 %v24, 4294901760
  %v281 = vsub.f32 %v24, %v280
  %282 = vmatpush1.msra.mxu0 %v281
  %v283 = vand.u32 %v29, 4294901760
  %v284 = vsub.f32 %v29, %v283
  %285 = vmatprep.subr.mxu0 %v284
  %v286 = vand.u32 %v28, 4294901760
  %v287 = vsub.f32 %v28, %v286
  %288 = vmatpush1.msra.mxu0 %v287
  %289 = vmatprep.subr.mxu0 0.0
  %290 = vmatpush1.msra.mxu0 0.0
  %291 = vmatprep.subr.mxu0 0.0
  %292 = vmatpush1.msra.mxu0 0.0
  %293 = vmatprep.subr.mxu0 0.0
  %294 = vmatpush1.msra.mxu0 0.0
  %295 = vmatprep.subr.mxu0 0.0
  %296 = vmatpush1.msra.mxu0 0.0
  %297 = vmatprep.subr.mxu0 0.0
  %298 = vmatpush1.msra.mxu0 0.0
  %299 = vmatprep.subr.mxu0 0.0
  %300 = vmatpush1.msra.mxu0 0.0
  %301 = vmatprep.subr.mxu0 0.0
  %302 = vmatpush1.msra.mxu0 0.0
  %303 = vmatprep.subr.mxu0 0.0
  %304 = vmatpush1.msra.mxu0 0.0
  %305 = vmatprep.subr.mxu0 0.0
  %306 = vmatpush1.msra.mxu0 0.0
  %307 = vmatprep.subr.mxu0 0.0
  %308 = vmatpush1.msra.mxu0 0.0
  %309 = vmatprep.subr.mxu0 0.0
  %310 = vmatpush1.msra.mxu0 0.0
  %311 = vmatprep.subr.mxu0 0.0
  %312 = vmatpush1.msra.mxu0 0.0
  %313 = vmatprep.subr.mxu0 0.0
  %314 = vmatpush1.msra.mxu0 0.0
  %315 = vmatprep.subr.mxu0 0.0
  %316 = vmatpush1.msra.mxu0 0.0
  %317 = vmatprep.subr.mxu0 0.0
  %318 = vmatpush1.msra.mxu0 0.0
  %319 = vmatprep.subr.mxu0 0.0
  %320 = vmatpush1.msra.mxu0 0.0
  %321 = vmatprep.subr.mxu0 0.0
  %322 = vmatpush1.msra.mxu0 0.0
  %323 = vmatprep.subr.mxu0 0.0
  %324 = vmatpush1.msra.mxu0 0.0
  %325 = vmatprep.subr.mxu0 0.0
  %326 = vmatpush1.msra.mxu0 0.0
  %327 = vmatprep.subr.mxu0 0.0
  %328 = vmatpush1.msra.mxu0 0.0
  %329 = vmatprep.subr.mxu0 0.0
  %330 = vmatpush1.msra.mxu0 0.0
  %331 = vmatprep.subr.mxu0 0.0
  %332 = vmatpush1.msra.mxu0 0.0
  %333 = vmatprep.subr.mxu0 0.0
  %334 = vmatpush1.msra.mxu0 0.0
  %335 = vmatprep.subr.mxu0 0.0
  %336 = vmatpush1.msra.mxu0 0.0
  %337 = vmatprep.subr.mxu0 0.0
  %338 = vmatpush1.msra.mxu0 0.0
  %339 = vmatprep.subr.mxu0 0.0
  %340 = vmatpush1.msra.mxu0 0.0
  %341 = vmatprep.subr.mxu0 0.0
  %342 = vmatpush1.msra.mxu0 0.0
  %343 = vmatprep.subr.mxu0 0.0
  %344 = vmatpush1.msra.mxu0 0.0
  %345 = vmatprep.mubr.f32.mxu0 0.0
  %v346 = vand.u32 %v46, 4294901760
  %v347 = vsub.f32 %v46, %v346
  %348 = vmatmul.mubr.f32.gmra.mrb[0].mxu0 %v347
  %v349 = vpop.f32.mrb[0].mxu0
  %v350 = vadd.f32 %v254, %v349
  %v351 = vpop.f32.mrb[0].mxu0
  %v352 = vadd.f32 %v256, %v351
  %353 = vmatprep.mubr.f32.mxu0 0.0
  %v354 = vand.u32 %v49, 4294901760
  %v355 = vsub.f32 %v49, %v354
  %356 = vmatmul.mubr.f32.gmra.mrb[0].mxu0 %v355
  %v357 = vpop.f32.mrb[0].mxu0
  %v358 = vadd.f32 %v261, %v357
  %v359 = vpop.f32.mrb[0].mxu0
  %v360 = vadd.f32 %v263, %v359
  %361 = vdwg.mxu0
  %v362 = vand.u32 %v17, 4294901760
  %363 = vmatprep.subr.mxu0 %v362
  %v364 = vand.u32 %v16, 4294901760
  %365 = vmatpush1.msra.mxu0 %v364
  %v366 = vand.u32 %v21, 4294901760
  %367 = vmatprep.subr.mxu0 %v366
  %v368 = vand.u32 %v20, 4294901760
  %369 = vmatpush1.msra.mxu0 %v368
  %v370 = vand.u32 %v25, 4294901760
  %371 = vmatprep.subr.mxu0 %v370
  %v372 = vand.u32 %v24, 4294901760
  %373 = vmatpush1.msra.mxu0 %v372
  %v374 = vand.u32 %v29, 4294901760
  %375 = vmatprep.subr.mxu0 %v374
  %v376 = vand.u32 %v28, 4294901760
  %377 = vmatpush1.msra.mxu0 %v376
  %378 = vmatprep.subr.mxu0 0.0
  %379 = vmatpush1.msra.mxu0 0.0
  %380 = vmatprep.subr.mxu0 0.0
  %381 = vmatpush1.msra.mxu0 0.0
  %382 = vmatprep.subr.mxu0 0.0
  %383 = vmatpush1.msra.mxu0 0.0
  %384 = vmatprep.subr.mxu0 0.0
  %385 = vmatpush1.msra.mxu0 0.0
  %386 = vmatprep.subr.mxu0 0.0
  %387 = vmatpush1.msra.mxu0 0.0
  %388 = vmatprep.subr.mxu0 0.0
  %389 = vmatpush1.msra.mxu0 0.0
  %390 = vmatprep.subr.mxu0 0.0
  %391 = vmatpush1.msra.mxu0 0.0
  %392 = vmatprep.subr.mxu0 0.0
  %393 = vmatpush1.msra.mxu0 0.0
  %394 = vmatprep.subr.mxu0 0.0
  %395 = vmatpush1.msra.mxu0 0.0
  %396 = vmatprep.subr.mxu0 0.0
  %397 = vmatpush1.msra.mxu0 0.0
  %398 = vmatprep.subr.mxu0 0.0
  %399 = vmatpush1.msra.mxu0 0.0
  %400 = vmatprep.subr.mxu0 0.0
  %401 = vmatpush1.msra.mxu0 0.0
  %402 = vmatprep.subr.mxu0 0.0
  %403 = vmatpush1.msra.mxu0 0.0
  %404 = vmatprep.subr.mxu0 0.0
  %405 = vmatpush1.msra.mxu0 0.0
  %406 = vmatprep.subr.mxu0 0.0
  %407 = vmatpush1.msra.mxu0 0.0
  %408 = vmatprep.subr.mxu0 0.0
  %409 = vmatpush1.msra.mxu0 0.0
  %410 = vmatprep.subr.mxu0 0.0
  %411 = vmatpush1.msra.mxu0 0.0
  %412 = vmatprep.subr.mxu0 0.0
  %413 = vmatpush1.msra.mxu0 0.0
  %414 = vmatprep.subr.mxu0 0.0
  %415 = vmatpush1.msra.mxu0 0.0
  %416 = vmatprep.subr.mxu0 0.0
  %417 = vmatpush1.msra.mxu0 0.0
  %418 = vmatprep.subr.mxu0 0.0
  %419 = vmatpush1.msra.mxu0 0.0
  %420 = vmatprep.subr.mxu0 0.0
  %421 = vmatpush1.msra.mxu0 0.0
  %422 = vmatprep.subr.mxu0 0.0
  %423 = vmatpush1.msra.mxu0 0.0
  %424 = vmatprep.subr.mxu0 0.0
  %425 = vmatpush1.msra.mxu0 0.0
  %426 = vmatprep.subr.mxu0 0.0
  %427 = vmatpush1.msra.mxu0 0.0
  %428 = vmatprep.subr.mxu0 0.0
  %429 = vmatpush1.msra.mxu0 0.0
  %430 = vmatprep.subr.mxu0 0.0
  %431 = vmatpush1.msra.mxu0 0.0
  %432 = vmatprep.subr.mxu0 0.0
  %433 = vmatpush1.msra.mxu0 0.0
  %434 = vmatprep.mubr.f32.mxu0 0.0
  %v435 = vand.u32 %v46, 4294901760
  %v436 = vsub.f32 %v46, %v435
  %v437 = vand.u32 %v436, 4294901760
  %438 = vmatmul.mubr.f32.gmra.mrb[0].mxu0 %v437
  %v439 = vpop.f32.mrb[0].mxu0
  %v440 = vadd.f32 %v350, %v439
  %v441 = vpop.f32.mrb[0].mxu0
  %v442 = vadd.f32 %v352, %v441
  %443 = vmatprep.mubr.f32.mxu0 0.0
  %v444 = vand.u32 %v49, 4294901760
  %v445 = vsub.f32 %v49, %v444
  %v446 = vand.u32 %v445, 4294901760
  %447 = vmatmul.mubr.f32.gmra.mrb[0].mxu0 %v446
  %v448 = vpop.f32.mrb[0].mxu0
  %v449 = vadd.f32 %v358, %v448
  %v450 = vpop.f32.mrb[0].mxu0
  %v451 = vadd.f32 %v360, %v450
  %452 = vdwg.mxu0
  %v453 = vand.u32 %v17, 4294901760
  %v454 = vsub.f32 %v17, %v453
  %v455 = vand.u32 %v454, 4294901760
  %456 = vmatprep.subr.mxu0 %v455
  %v457 = vand.u32 %v16, 4294901760
  %v458 = vsub.f32 %v16, %v457
  %v459 = vand.u32 %v458, 4294901760
  %460 = vmatpush1.msra.mxu0 %v459
  %v461 = vand.u32 %v21, 4294901760
  %v462 = vsub.f32 %v21, %v461
  %v463 = vand.u32 %v462, 4294901760
  %464 = vmatprep.subr.mxu0 %v463
  %v465 = vand.u32 %v20, 4294901760
  %v466 = vsub.f32 %v20, %v465
  %v467 = vand.u32 %v466, 4294901760
  %468 = vmatpush1.msra.mxu0 %v467
  %v469 = vand.u32 %v25, 4294901760
  %v470 = vsub.f32 %v25, %v469
  %v471 = vand.u32 %v470, 4294901760
  %472 = vmatprep.subr.mxu0 %v471
  %v473 = vand.u32 %v24, 4294901760
  %v474 = vsub.f32 %v24, %v473
  %v475 = vand.u32 %v474, 4294901760
  %476 = vmatpush1.msra.mxu0 %v475
  %v477 = vand.u32 %v29, 4294901760
  %v478 = vsub.f32 %v29, %v477
  %v479 = vand.u32 %v478, 4294901760
  %480 = vmatprep.subr.mxu0 %v479
  %v481 = vand.u32 %v28, 4294901760
  %v482 = vsub.f32 %v28, %v481
  %v483 = vand.u32 %v482, 4294901760
  %484 = vmatpush1.msra.mxu0 %v483
  %485 = vmatprep.subr.mxu0 0.0
  %486 = vmatpush1.msra.mxu0 0.0
  %487 = vmatprep.subr.mxu0 0.0
  %488 = vmatpush1.msra.mxu0 0.0
  %489 = vmatprep.subr.mxu0 0.0
  %490 = vmatpush1.msra.mxu0 0.0
  %491 = vmatprep.subr.mxu0 0.0
  %492 = vmatpush1.msra.mxu0 0.0
  %493 = vmatprep.subr.mxu0 0.0
  %494 = vmatpush1.msra.mxu0 0.0
  %495 = vmatprep.subr.mxu0 0.0
  %496 = vmatpush1.msra.mxu0 0.0
  %497 = vmatprep.subr.mxu0 0.0
  %498 = vmatpush1.msra.mxu0 0.0
  %499 = vmatprep.subr.mxu0 0.0
  %500 = vmatpush1.msra.mxu0 0.0
  %501 = vmatprep.subr.mxu0 0.0
  %502 = vmatpush1.msra.mxu0 0.0
  %503 = vmatprep.subr.mxu0 0.0
  %504 = vmatpush1.msra.mxu0 0.0
  %505 = vmatprep.subr.mxu0 0.0
  %506 = vmatpush1.msra.mxu0 0.0
  %507 = vmatprep.subr.mxu0 0.0
  %508 = vmatpush1.msra.mxu0 0.0
  %509 = vmatprep.subr.mxu0 0.0
  %510 = vmatpush1.msra.mxu0 0.0
  %511 = vmatprep.subr.mxu0 0.0
  %512 = vmatpush1.msra.mxu0 0.0
  %513 = vmatprep.subr.mxu0 0.0
  %514 = vmatpush1.msra.mxu0 0.0
  %515 = vmatprep.subr.mxu0 0.0
  %516 = vmatpush1.msra.mxu0 0.0
  %517 = vmatprep.subr.mxu0 0.0
  %518 = vmatpush1.msra.mxu0 0.0
  %519 = vmatprep.subr.mxu0 0.0
  %520 = vmatpush1.msra.mxu0 0.0
  %521 = vmatprep.subr.mxu0 0.0
  %522 = vmatpush1.msra.mxu0 0.0
  %523 = vmatprep.subr.mxu0 0.0
  %524 = vmatpush1.msra.mxu0 0.0
  %525 = vmatprep.subr.mxu0 0.0
  %526 = vmatpush1.msra.mxu0 0.0
  %527 = vmatprep.subr.mxu0 0.0
  %528 = vmatpush1.msra.mxu0 0.0
  %529 = vmatprep.subr.mxu0 0.0
  %530 = vmatpush1.msra.mxu0 0.0
  %531 = vmatprep.subr.mxu0 0.0
  %532 = vmatpush1.msra.mxu0 0.0
  %533 = vmatprep.subr.mxu0 0.0
  %534 = vmatpush1.msra.mxu0 0.0
  %535 = vmatprep.subr.mxu0 0.0
  %536 = vmatpush1.msra.mxu0 0.0
  %537 = vmatprep.subr.mxu0 0.0
  %538 = vmatpush1.msra.mxu0 0.0
  %539 = vmatprep.subr.mxu0 0.0
  %540 = vmatpush1.msra.mxu0 0.0
  %541 = vmatprep.mubr.f32.mxu0 0.0
  %v542 = vand.u32 %v46, 4294901760
  %543 = vmatmul.mubr.f32.gmra.mrb[0].mxu0 %v542
  %v544 = vpop.f32.mrb[0].mxu0
  %v545 = vadd.f32 %v440, %v544
  %v546 = vpop.f32.mrb[0].mxu0
  %v547 = vadd.f32 %v442, %v546
  %548 = vmatprep.mubr.f32.mxu0 0.0
  %v549 = vand.u32 %v49, 4294901760
  %550 = vmatmul.mubr.f32.gmra.mrb[0].mxu0 %v549
  %v551 = vpop.f32.mrb[0].mxu0
  %v552 = vadd.f32 %v449, %v551
  %v553 = vpop.f32.mrb[0].mxu0
  %v554 = vadd.f32 %v451, %v553
  %555 = vdwg.mxu0
  %v556 = vand.u32 %v17, 4294901760
  %557 = vmatprep.subr.mxu0 %v556
  %v558 = vand.u32 %v16, 4294901760
  %559 = vmatpush1.msra.mxu0 %v558
  %v560 = vand.u32 %v21, 4294901760
  %561 = vmatprep.subr.mxu0 %v560
  %v562 = vand.u32 %v20, 4294901760
  %563 = vmatpush1.msra.mxu0 %v562
  %v564 = vand.u32 %v25, 4294901760
  %565 = vmatprep.subr.mxu0 %v564
  %v566 = vand.u32 %v24, 4294901760
  %567 = vmatpush1.msra.mxu0 %v566
  %v568 = vand.u32 %v29, 4294901760
  %569 = vmatprep.subr.mxu0 %v568
  %v570 = vand.u32 %v28, 4294901760
  %571 = vmatpush1.msra.mxu0 %v570
  %572 = vmatprep.subr.mxu0 0.0
  %573 = vmatpush1.msra.mxu0 0.0
  %574 = vmatprep.subr.mxu0 0.0
  %575 = vmatpush1.msra.mxu0 0.0
  %576 = vmatprep.subr.mxu0 0.0
  %577 = vmatpush1.msra.mxu0 0.0
  %578 = vmatprep.subr.mxu0 0.0
  %579 = vmatpush1.msra.mxu0 0.0
  %580 = vmatprep.subr.mxu0 0.0
  %581 = vmatpush1.msra.mxu0 0.0
  %582 = vmatprep.subr.mxu0 0.0
  %583 = vmatpush1.msra.mxu0 0.0
  %584 = vmatprep.subr.mxu0 0.0
  %585 = vmatpush1.msra.mxu0 0.0
  %586 = vmatprep.subr.mxu0 0.0
  %587 = vmatpush1.msra.mxu0 0.0
  %588 = vmatprep.subr.mxu0 0.0
  %589 = vmatpush1.msra.mxu0 0.0
  %590 = vmatprep.subr.mxu0 0.0
  %591 = vmatpush1.msra.mxu0 0.0
  %592 = vmatprep.subr.mxu0 0.0
  %593 = vmatpush1.msra.mxu0 0.0
  %594 = vmatprep.subr.mxu0 0.0
  %595 = vmatpush1.msra.mxu0 0.0
  %596 = vmatprep.subr.mxu0 0.0
  %597 = vmatpush1.msra.mxu0 0.0
  %598 = vmatprep.subr.mxu0 0.0
  %599 = vmatpush1.msra.mxu0 0.0
  %600 = vmatprep.subr.mxu0 0.0
  %601 = vmatpush1.msra.mxu0 0.0
  %602 = vmatprep.subr.mxu0 0.0
  %603 = vmatpush1.msra.mxu0 0.0
  %604 = vmatprep.subr.mxu0 0.0
  %605 = vmatpush1.msra.mxu0 0.0
  %606 = vmatprep.subr.mxu0 0.0
  %607 = vmatpush1.msra.mxu0 0.0
  %608 = vmatprep.subr.mxu0 0.0
  %609 = vmatpush1.msra.mxu0 0.0
  %610 = vmatprep.subr.mxu0 0.0
  %611 = vmatpush1.msra.mxu0 0.0
  %612 = vmatprep.subr.mxu0 0.0
  %613 = vmatpush1.msra.mxu0 0.0
  %614 = vmatprep.subr.mxu0 0.0
  %615 = vmatpush1.msra.mxu0 0.0
  %616 = vmatprep.subr.mxu0 0.0
  %617 = vmatpush1.msra.mxu0 0.0
  %618 = vmatprep.subr.mxu0 0.0
  %619 = vmatpush1.msra.mxu0 0.0
  %620 = vmatprep.subr.mxu0 0.0
  %621 = vmatpush1.msra.mxu0 0.0
  %622 = vmatprep.subr.mxu0 0.0
  %623 = vmatpush1.msra.mxu0 0.0
  %624 = vmatprep.subr.mxu0 0.0
  %625 = vmatpush1.msra.mxu0 0.0
  %626 = vmatprep.subr.mxu0 0.0
  %627 = vmatpush1.msra.mxu0 0.0
  %628 = vmatprep.mubr.f32.mxu0 0.0
  %v629 = vand.u32 %v46, 4294901760
  %630 = vmatmul.mubr.f32.gmra.mrb[0].mxu0 %v629
  %v631 = vpop.f32.mrb[0].mxu0
  %v632 = vadd.f32 %v545, %v631
  %v633 = vpop.f32.mrb[0].mxu0
  %v634 = vadd.f32 %v547, %v633
  %635 = vmatprep.mubr.f32.mxu0 0.0
  %v636 = vand.u32 %v49, 4294901760
  %637 = vmatmul.mubr.f32.gmra.mrb[0].mxu0 %v636
  %v638 = vpop.f32.mrb[0].mxu0
  %v639 = vadd.f32 %v552, %v638
  %v640 = vpop.f32.mrb[0].mxu0
  %v641 = vadd.f32 %v554, %v640
  %642 = vdwg.mxu0
  %v643 = vand.u32 %v19, 4294901760
  %644 = vmatprep.subr.mxu0 %v643
  %v645 = vand.u32 %v18, 4294901760
  %646 = vmatpush1.msra.mxu0 %v645
  %v647 = vand.u32 %v23, 4294901760
  %648 = vmatprep.subr.mxu0 %v647
  %v649 = vand.u32 %v22, 4294901760
  %650 = vmatpush1.msra.mxu0 %v649
  %v651 = vand.u32 %v27, 4294901760
  %652 = vmatprep.subr.mxu0 %v651
  %v653 = vand.u32 %v26, 4294901760
  %654 = vmatpush1.msra.mxu0 %v653
  %v655 = vand.u32 %v31, 4294901760
  %656 = vmatprep.subr.mxu0 %v655
  %v657 = vand.u32 %v30, 4294901760
  %658 = vmatpush1.msra.mxu0 %v657
  %659 = vmatprep.subr.mxu0 0.0
  %660 = vmatpush1.msra.mxu0 0.0
  %661 = vmatprep.subr.mxu0 0.0
  %662 = vmatpush1.msra.mxu0 0.0
  %663 = vmatprep.subr.mxu0 0.0
  %664 = vmatpush1.msra.mxu0 0.0
  %665 = vmatprep.subr.mxu0 0.0
  %666 = vmatpush1.msra.mxu0 0.0
  %667 = vmatprep.subr.mxu0 0.0
  %668 = vmatpush1.msra.mxu0 0.0
  %669 = vmatprep.subr.mxu0 0.0
  %670 = vmatpush1.msra.mxu0 0.0
  %671 = vmatprep.subr.mxu0 0.0
  %672 = vmatpush1.msra.mxu0 0.0
  %673 = vmatprep.subr.mxu0 0.0
  %674 = vmatpush1.msra.mxu0 0.0
  %675 = vmatprep.subr.mxu0 0.0
  %676 = vmatpush1.msra.mxu0 0.0
  %677 = vmatprep.subr.mxu0 0.0
  %678 = vmatpush1.msra.mxu0 0.0
  %679 = vmatprep.subr.mxu0 0.0
  %680 = vmatpush1.msra.mxu0 0.0
  %681 = vmatprep.subr.mxu0 0.0
  %682 = vmatpush1.msra.mxu0 0.0
  %683 = vmatprep.subr.mxu0 0.0
  %684 = vmatpush1.msra.mxu0 0.0
  %685 = vmatprep.subr.mxu0 0.0
  %686 = vmatpush1.msra.mxu0 0.0
  %687 = vmatprep.subr.mxu0 0.0
  %688 = vmatpush1.msra.mxu0 0.0
  %689 = vmatprep.subr.mxu0 0.0
  %690 = vmatpush1.msra.mxu0 0.0
  %691 = vmatprep.subr.mxu0 0.0
  %692 = vmatpush1.msra.mxu0 0.0
  %693 = vmatprep.subr.mxu0 0.0
  %694 = vmatpush1.msra.mxu0 0.0
  %695 = vmatprep.subr.mxu0 0.0
  %696 = vmatpush1.msra.mxu0 0.0
  %697 = vmatprep.subr.mxu0 0.0
  %698 = vmatpush1.msra.mxu0 0.0
  %699 = vmatprep.subr.mxu0 0.0
  %700 = vmatpush1.msra.mxu0 0.0
  %701 = vmatprep.subr.mxu0 0.0
  %702 = vmatpush1.msra.mxu0 0.0
  %703 = vmatprep.subr.mxu0 0.0
  %704 = vmatpush1.msra.mxu0 0.0
  %705 = vmatprep.subr.mxu0 0.0
  %706 = vmatpush1.msra.mxu0 0.0
  %707 = vmatprep.subr.mxu0 0.0
  %708 = vmatpush1.msra.mxu0 0.0
  %709 = vmatprep.subr.mxu0 0.0
  %710 = vmatpush1.msra.mxu0 0.0
  %711 = vmatprep.subr.mxu0 0.0
  %712 = vmatpush1.msra.mxu0 0.0
  %713 = vmatprep.subr.mxu0 0.0
  %714 = vmatpush1.msra.mxu0 0.0
  %715 = vmatprep.mubr.f32.mxu0 0.0
  %v716 = vand.u32 %v46, 4294901760
  %v717 = vsub.f32 %v46, %v716
  %v718 = vand.u32 %v717, 4294901760
  %v719 = vsub.f32 %v717, %v718
  %v720 = vand.u32 %v719, 4294901760
  %721 = vmatmul.mubr.f32.gmra.mrb[0].mxu0 %v720
  %v722 = vpop.f32.mrb[0].mxu0
  %v723 = vadd.f32 %v37, %v722
  %v724 = vpop.f32.mrb[0].mxu0
  %v725 = vadd.f32 %v37, %v724
  %726 = vmatprep.mubr.f32.mxu0 0.0
  %v727 = vand.u32 %v49, 4294901760
  %v728 = vsub.f32 %v49, %v727
  %v729 = vand.u32 %v728, 4294901760
  %v730 = vsub.f32 %v728, %v729
  %v731 = vand.u32 %v730, 4294901760
  %732 = vmatmul.mubr.f32.gmra.mrb[0].mxu0 %v731
  %v733 = vpop.f32.mrb[0].mxu0
  %v734 = vadd.f32 %v42, %v733
  %v735 = vpop.f32.mrb[0].mxu0
  %v736 = vadd.f32 %v42, %v735
  %737 = vdwg.mxu0
  %v738 = vand.u32 %v19, 4294901760
  %v739 = vsub.f32 %v19, %v738
  %v740 = vand.u32 %v739, 4294901760
  %v741 = vsub.f32 %v739, %v740
  %v742 = vand.u32 %v741, 4294901760
  %743 = vmatprep.subr.mxu0 %v742
  %v744 = vand.u32 %v18, 4294901760
  %v745 = vsub.f32 %v18, %v744
  %v746 = vand.u32 %v745, 4294901760
  %v747 = vsub.f32 %v745, %v746
  %v748 = vand.u32 %v747, 4294901760
  %749 = vmatpush1.msra.mxu0 %v748
  %v750 = vand.u32 %v23, 4294901760
  %v751 = vsub.f32 %v23, %v750
  %v752 = vand.u32 %v751, 4294901760
  %v753 = vsub.f32 %v751, %v752
  %v754 = vand.u32 %v753, 4294901760
  %755 = vmatprep.subr.mxu0 %v754
  %v756 = vand.u32 %v22, 4294901760
  %v757 = vsub.f32 %v22, %v756
  %v758 = vand.u32 %v757, 4294901760
  %v759 = vsub.f32 %v757, %v758
  %v760 = vand.u32 %v759, 4294901760
  %761 = vmatpush1.msra.mxu0 %v760
  %v762 = vand.u32 %v27, 4294901760
  %v763 = vsub.f32 %v27, %v762
  %v764 = vand.u32 %v763, 4294901760
  %v765 = vsub.f32 %v763, %v764
  %v766 = vand.u32 %v765, 4294901760
  %767 = vmatprep.subr.mxu0 %v766
  %v768 = vand.u32 %v26, 4294901760
  %v769 = vsub.f32 %v26, %v768
  %v770 = vand.u32 %v769, 4294901760
  %v771 = vsub.f32 %v769, %v770
  %v772 = vand.u32 %v771, 4294901760
  %773 = vmatpush1.msra.mxu0 %v772
  %v774 = vand.u32 %v31, 4294901760
  %v775 = vsub.f32 %v31, %v774
  %v776 = vand.u32 %v775, 4294901760
  %v777 = vsub.f32 %v775, %v776
  %v778 = vand.u32 %v777, 4294901760
  %779 = vmatprep.subr.mxu0 %v778
  %v780 = vand.u32 %v30, 4294901760
  %v781 = vsub.f32 %v30, %v780
  %v782 = vand.u32 %v781, 4294901760
  %v783 = vsub.f32 %v781, %v782
  %v784 = vand.u32 %v783, 4294901760
  %785 = vmatpush1.msra.mxu0 %v784
  %786 = vmatprep.subr.mxu0 0.0
  %787 = vmatpush1.msra.mxu0 0.0
  %788 = vmatprep.subr.mxu0 0.0
  %789 = vmatpush1.msra.mxu0 0.0
  %790 = vmatprep.subr.mxu0 0.0
  %791 = vmatpush1.msra.mxu0 0.0
  %792 = vmatprep.subr.mxu0 0.0
  %793 = vmatpush1.msra.mxu0 0.0
  %794 = vmatprep.subr.mxu0 0.0
  %795 = vmatpush1.msra.mxu0 0.0
  %796 = vmatprep.subr.mxu0 0.0
  %797 = vmatpush1.msra.mxu0 0.0
  %798 = vmatprep.subr.mxu0 0.0
  %799 = vmatpush1.msra.mxu0 0.0
  %800 = vmatprep.subr.mxu0 0.0
  %801 = vmatpush1.msra.mxu0 0.0
  %802 = vmatprep.subr.mxu0 0.0
  %803 = vmatpush1.msra.mxu0 0.0
  %804 = vmatprep.subr.mxu0 0.0
  %805 = vmatpush1.msra.mxu0 0.0
  %806 = vmatprep.subr.mxu0 0.0
  %807 = vmatpush1.msra.mxu0 0.0
  %808 = vmatprep.subr.mxu0 0.0
  %809 = vmatpush1.msra.mxu0 0.0
  %810 = vmatprep.subr.mxu0 0.0
  %811 = vmatpush1.msra.mxu0 0.0
  %812 = vmatprep.subr.mxu0 0.0
  %813 = vmatpush1.msra.mxu0 0.0
  %814 = vmatprep.subr.mxu0 0.0
  %815 = vmatpush1.msra.mxu0 0.0
  %816 = vmatprep.subr.mxu0 0.0
  %817 = vmatpush1.msra.mxu0 0.0
  %818 = vmatprep.subr.mxu0 0.0
  %819 = vmatpush1.msra.mxu0 0.0
  %820 = vmatprep.subr.mxu0 0.0
  %821 = vmatpush1.msra.mxu0 0.0
  %822 = vmatprep.subr.mxu0 0.0
  %823 = vmatpush1.msra.mxu0 0.0
  %824 = vmatprep.subr.mxu0 0.0
  %825 = vmatpush1.msra.mxu0 0.0
  %826 = vmatprep.subr.mxu0 0.0
  %827 = vmatpush1.msra.mxu0 0.0
  %828 = vmatprep.subr.mxu0 0.0
  %829 = vmatpush1.msra.mxu0 0.0
  %830 = vmatprep.subr.mxu0 0.0
  %831 = vmatpush1.msra.mxu0 0.0
  %832 = vmatprep.subr.mxu0 0.0
  %833 = vmatpush1.msra.mxu0 0.0
  %834 = vmatprep.subr.mxu0 0.0
  %835 = vmatpush1.msra.mxu0 0.0
  %836 = vmatprep.subr.mxu0 0.0
  %837 = vmatpush1.msra.mxu0 0.0
  %838 = vmatprep.subr.mxu0 0.0
  %839 = vmatpush1.msra.mxu0 0.0
  %840 = vmatprep.subr.mxu0 0.0
  %841 = vmatpush1.msra.mxu0 0.0
  %842 = vmatprep.mubr.f32.mxu0 0.0
  %v843 = vand.u32 %v46, 4294901760
  %844 = vmatmul.mubr.f32.gmra.mrb[0].mxu0 %v843
  %v845 = vpop.f32.mrb[0].mxu0
  %v846 = vadd.f32 %v723, %v845
  %v847 = vpop.f32.mrb[0].mxu0
  %v848 = vadd.f32 %v725, %v847
  %849 = vmatprep.mubr.f32.mxu0 0.0
  %v850 = vand.u32 %v49, 4294901760
  %851 = vmatmul.mubr.f32.gmra.mrb[0].mxu0 %v850
  %v852 = vpop.f32.mrb[0].mxu0
  %v853 = vadd.f32 %v734, %v852
  %v854 = vpop.f32.mrb[0].mxu0
  %v855 = vadd.f32 %v736, %v854
  %856 = vdwg.mxu0
  %v857 = vand.u32 %v19, 4294901760
  %v858 = vsub.f32 %v19, %v857
  %859 = vmatprep.subr.mxu0 %v858
  %v860 = vand.u32 %v18, 4294901760
  %v861 = vsub.f32 %v18, %v860
  %862 = vmatpush1.msra.mxu0 %v861
  %v863 = vand.u32 %v23, 4294901760
  %v864 = vsub.f32 %v23, %v863
  %865 = vmatprep.subr.mxu0 %v864
  %v866 = vand.u32 %v22, 4294901760
  %v867 = vsub.f32 %v22, %v866
  %868 = vmatpush1.msra.mxu0 %v867
  %v869 = vand.u32 %v27, 4294901760
  %v870 = vsub.f32 %v27, %v869
  %871 = vmatprep.subr.mxu0 %v870
  %v872 = vand.u32 %v26, 4294901760
  %v873 = vsub.f32 %v26, %v872
  %874 = vmatpush1.msra.mxu0 %v873
  %v875 = vand.u32 %v31, 4294901760
  %v876 = vsub.f32 %v31, %v875
  %877 = vmatprep.subr.mxu0 %v876
  %v878 = vand.u32 %v30, 4294901760
  %v879 = vsub.f32 %v30, %v878
  %880 = vmatpush1.msra.mxu0 %v879
  %881 = vmatprep.subr.mxu0 0.0
  %882 = vmatpush1.msra.mxu0 0.0
  %883 = vmatprep.subr.mxu0 0.0
  %884 = vmatpush1.msra.mxu0 0.0
  %885 = vmatprep.subr.mxu0 0.0
  %886 = vmatpush1.msra.mxu0 0.0
  %887 = vmatprep.subr.mxu0 0.0
  %888 = vmatpush1.msra.mxu0 0.0
  %889 = vmatprep.subr.mxu0 0.0
  %890 = vmatpush1.msra.mxu0 0.0
  %891 = vmatprep.subr.mxu0 0.0
  %892 = vmatpush1.msra.mxu0 0.0
  %893 = vmatprep.subr.mxu0 0.0
  %894 = vmatpush1.msra.mxu0 0.0
  %895 = vmatprep.subr.mxu0 0.0
  %896 = vmatpush1.msra.mxu0 0.0
  %897 = vmatprep.subr.mxu0 0.0
  %898 = vmatpush1.msra.mxu0 0.0
  %899 = vmatprep.subr.mxu0 0.0
  %900 = vmatpush1.msra.mxu0 0.0
  %901 = vmatprep.subr.mxu0 0.0
  %902 = vmatpush1.msra.mxu0 0.0
  %903 = vmatprep.subr.mxu0 0.0
  %904 = vmatpush1.msra.mxu0 0.0
  %905 = vmatprep.subr.mxu0 0.0
  %906 = vmatpush1.msra.mxu0 0.0
  %907 = vmatprep.subr.mxu0 0.0
  %908 = vmatpush1.msra.mxu0 0.0
  %909 = vmatprep.subr.mxu0 0.0
  %910 = vmatpush1.msra.mxu0 0.0
  %911 = vmatprep.subr.mxu0 0.0
  %912 = vmatpush1.msra.mxu0 0.0
  %913 = vmatprep.subr.mxu0 0.0
  %914 = vmatpush1.msra.mxu0 0.0
  %915 = vmatprep.subr.mxu0 0.0
  %916 = vmatpush1.msra.mxu0 0.0
  %917 = vmatprep.subr.mxu0 0.0
  %918 = vmatpush1.msra.mxu0 0.0
  %919 = vmatprep.subr.mxu0 0.0
  %920 = vmatpush1.msra.mxu0 0.0
  %921 = vmatprep.subr.mxu0 0.0
  %922 = vmatpush1.msra.mxu0 0.0
  %923 = vmatprep.subr.mxu0 0.0
  %924 = vmatpush1.msra.mxu0 0.0
  %925 = vmatprep.subr.mxu0 0.0
  %926 = vmatpush1.msra.mxu0 0.0
  %927 = vmatprep.subr.mxu0 0.0
  %928 = vmatpush1.msra.mxu0 0.0
  %929 = vmatprep.subr.mxu0 0.0
  %930 = vmatpush1.msra.mxu0 0.0
  %931 = vmatprep.subr.mxu0 0.0
  %932 = vmatpush1.msra.mxu0 0.0
  %933 = vmatprep.subr.mxu0 0.0
  %934 = vmatpush1.msra.mxu0 0.0
  %935 = vmatprep.subr.mxu0 0.0
  %936 = vmatpush1.msra.mxu0 0.0
  %937 = vmatprep.mubr.f32.mxu0 0.0
  %v938 = vand.u32 %v46, 4294901760
  %v939 = vsub.f32 %v46, %v938
  %940 = vmatmul.mubr.f32.gmra.mrb[0].mxu0 %v939
  %v941 = vpop.f32.mrb[0].mxu0
  %v942 = vadd.f32 %v846, %v941
  %v943 = vpop.f32.mrb[0].mxu0
  %v944 = vadd.f32 %v848, %v943
  %945 = vmatprep.mubr.f32.mxu0 0.0
  %v946 = vand.u32 %v49, 4294901760
  %v947 = vsub.f32 %v49, %v946
  %948 = vmatmul.mubr.f32.gmra.mrb[0].mxu0 %v947
  %v949 = vpop.f32.mrb[0].mxu0
  %v950 = vadd.f32 %v853, %v949
  %v951 = vpop.f32.mrb[0].mxu0
  %v952 = vadd.f32 %v855, %v951
  %953 = vdwg.mxu0
  %v954 = vand.u32 %v19, 4294901760
  %955 = vmatprep.subr.mxu0 %v954
  %v956 = vand.u32 %v18, 4294901760
  %957 = vmatpush1.msra.mxu0 %v956
  %v958 = vand.u32 %v23, 4294901760
  %959 = vmatprep.subr.mxu0 %v958
  %v960 = vand.u32 %v22, 4294901760
  %961 = vmatpush1.msra.mxu0 %v960
  %v962 = vand.u32 %v27, 4294901760
  %963 = vmatprep.subr.mxu0 %v962
  %v964 = vand.u32 %v26, 4294901760
  %965 = vmatpush1.msra.mxu0 %v964
  %v966 = vand.u32 %v31, 4294901760
  %967 = vmatprep.subr.mxu0 %v966
  %v968 = vand.u32 %v30, 4294901760
  %969 = vmatpush1.msra.mxu0 %v968
  %970 = vmatprep.subr.mxu0 0.0
  %971 = vmatpush1.msra.mxu0 0.0
  %972 = vmatprep.subr.mxu0 0.0
  %973 = vmatpush1.msra.mxu0 0.0
  %974 = vmatprep.subr.mxu0 0.0
  %975 = vmatpush1.msra.mxu0 0.0
  %976 = vmatprep.subr.mxu0 0.0
  %977 = vmatpush1.msra.mxu0 0.0
  %978 = vmatprep.subr.mxu0 0.0
  %979 = vmatpush1.msra.mxu0 0.0
  %980 = vmatprep.subr.mxu0 0.0
  %981 = vmatpush1.msra.mxu0 0.0
  %982 = vmatprep.subr.mxu0 0.0
  %983 = vmatpush1.msra.mxu0 0.0
  %984 = vmatprep.subr.mxu0 0.0
  %985 = vmatpush1.msra.mxu0 0.0
  %986 = vmatprep.subr.mxu0 0.0
  %987 = vmatpush1.msra.mxu0 0.0
  %988 = vmatprep.subr.mxu0 0.0
  %989 = vmatpush1.msra.mxu0 0.0
  %990 = vmatprep.subr.mxu0 0.0
  %991 = vmatpush1.msra.mxu0 0.0
  %992 = vmatprep.subr.mxu0 0.0
  %993 = vmatpush1.msra.mxu0 0.0
  %994 = vmatprep.subr.mxu0 0.0
  %995 = vmatpush1.msra.mxu0 0.0
  %996 = vmatprep.subr.mxu0 0.0
  %997 = vmatpush1.msra.mxu0 0.0
  %998 = vmatprep.subr.mxu0 0.0
  %999 = vmatpush1.msra.mxu0 0.0
  %1000 = vmatprep.subr.mxu0 0.0
  %1001 = vmatpush1.msra.mxu0 0.0
  %1002 = vmatprep.subr.mxu0 0.0
  %1003 = vmatpush1.msra.mxu0 0.0
  %1004 = vmatprep.subr.mxu0 0.0
  %1005 = vmatpush1.msra.mxu0 0.0
  %1006 = vmatprep.subr.mxu0 0.0
  %1007 = vmatpush1.msra.mxu0 0.0
  %1008 = vmatprep.subr.mxu0 0.0
  %1009 = vmatpush1.msra.mxu0 0.0
  %1010 = vmatprep.subr.mxu0 0.0
  %1011 = vmatpush1.msra.mxu0 0.0
  %1012 = vmatprep.subr.mxu0 0.0
  %1013 = vmatpush1.msra.mxu0 0.0
  %1014 = vmatprep.subr.mxu0 0.0
  %1015 = vmatpush1.msra.mxu0 0.0
  %1016 = vmatprep.subr.mxu0 0.0
  %1017 = vmatpush1.msra.mxu0 0.0
  %1018 = vmatprep.subr.mxu0 0.0
  %1019 = vmatpush1.msra.mxu0 0.0
  %1020 = vmatprep.subr.mxu0 0.0
  %1021 = vmatpush1.msra.mxu0 0.0
  %1022 = vmatprep.subr.mxu0 0.0
  %1023 = vmatpush1.msra.mxu0 0.0
  %1024 = vmatprep.subr.mxu0 0.0
  %1025 = vmatpush1.msra.mxu0 0.0
  %1026 = vmatprep.mubr.f32.mxu0 0.0
  %v1027 = vand.u32 %v46, 4294901760
  %v1028 = vsub.f32 %v46, %v1027
  %v1029 = vand.u32 %v1028, 4294901760
  %1030 = vmatmul.mubr.f32.gmra.mrb[0].mxu0 %v1029
  %v1031 = vpop.f32.mrb[0].mxu0
  %v1032 = vadd.f32 %v942, %v1031
  %v1033 = vpop.f32.mrb[0].mxu0
  %v1034 = vadd.f32 %v944, %v1033
  %1035 = vmatprep.mubr.f32.mxu0 0.0
  %v1036 = vand.u32 %v49, 4294901760
  %v1037 = vsub.f32 %v49, %v1036
  %v1038 = vand.u32 %v1037, 4294901760
  %1039 = vmatmul.mubr.f32.gmra.mrb[0].mxu0 %v1038
  %v1040 = vpop.f32.mrb[0].mxu0
  %v1041 = vadd.f32 %v950, %v1040
  %v1042 = vpop.f32.mrb[0].mxu0
  %v1043 = vadd.f32 %v952, %v1042
  %1044 = vdwg.mxu0
  %v1045 = vand.u32 %v19, 4294901760
  %v1046 = vsub.f32 %v19, %v1045
  %v1047 = vand.u32 %v1046, 4294901760
  %1048 = vmatprep.subr.mxu0 %v1047
  %v1049 = vand.u32 %v18, 4294901760
  %v1050 = vsub.f32 %v18, %v1049
  %v1051 = vand.u32 %v1050, 4294901760
  %1052 = vmatpush1.msra.mxu0 %v1051
  %v1053 = vand.u32 %v23, 4294901760
  %v1054 = vsub.f32 %v23, %v1053
  %v1055 = vand.u32 %v1054, 4294901760
  %1056 = vmatprep.subr.mxu0 %v1055
  %v1057 = vand.u32 %v22, 4294901760
  %v1058 = vsub.f32 %v22, %v1057
  %v1059 = vand.u32 %v1058, 4294901760
  %1060 = vmatpush1.msra.mxu0 %v1059
  %v1061 = vand.u32 %v27, 4294901760
  %v1062 = vsub.f32 %v27, %v1061
  %v1063 = vand.u32 %v1062, 4294901760
  %1064 = vmatprep.subr.mxu0 %v1063
  %v1065 = vand.u32 %v26, 4294901760
  %v1066 = vsub.f32 %v26, %v1065
  %v1067 = vand.u32 %v1066, 4294901760
  %1068 = vmatpush1.msra.mxu0 %v1067
  %v1069 = vand.u32 %v31, 4294901760
  %v1070 = vsub.f32 %v31, %v1069
  %v1071 = vand.u32 %v1070, 4294901760
  %1072 = vmatprep.subr.mxu0 %v1071
  %v1073 = vand.u32 %v30, 4294901760
  %v1074 = vsub.f32 %v30, %v1073
  %v1075 = vand.u32 %v1074, 4294901760
  %1076 = vmatpush1.msra.mxu0 %v1075
  %1077 = vmatprep.subr.mxu0 0.0
  %1078 = vmatpush1.msra.mxu0 0.0
  %1079 = vmatprep.subr.mxu0 0.0
  %1080 = vmatpush1.msra.mxu0 0.0
  %1081 = vmatprep.subr.mxu0 0.0
  %1082 = vmatpush1.msra.mxu0 0.0
  %1083 = vmatprep.subr.mxu0 0.0
  %1084 = vmatpush1.msra.mxu0 0.0
  %1085 = vmatprep.subr.mxu0 0.0
  %1086 = vmatpush1.msra.mxu0 0.0
  %1087 = vmatprep.subr.mxu0 0.0
  %1088 = vmatpush1.msra.mxu0 0.0
  %1089 = vmatprep.subr.mxu0 0.0
  %1090 = vmatpush1.msra.mxu0 0.0
  %1091 = vmatprep.subr.mxu0 0.0
  %1092 = vmatpush1.msra.mxu0 0.0
  %1093 = vmatprep.subr.mxu0 0.0
  %1094 = vmatpush1.msra.mxu0 0.0
  %1095 = vmatprep.subr.mxu0 0.0
  %1096 = vmatpush1.msra.mxu0 0.0
  %1097 = vmatprep.subr.mxu0 0.0
  %1098 = vmatpush1.msra.mxu0 0.0
  %1099 = vmatprep.subr.mxu0 0.0
  %1100 = vmatpush1.msra.mxu0 0.0
  %1101 = vmatprep.subr.mxu0 0.0
  %1102 = vmatpush1.msra.mxu0 0.0
  %1103 = vmatprep.subr.mxu0 0.0
  %1104 = vmatpush1.msra.mxu0 0.0
  %1105 = vmatprep.subr.mxu0 0.0
  %1106 = vmatpush1.msra.mxu0 0.0
  %1107 = vmatprep.subr.mxu0 0.0
  %1108 = vmatpush1.msra.mxu0 0.0
  %1109 = vmatprep.subr.mxu0 0.0
  %1110 = vmatpush1.msra.mxu0 0.0
  %1111 = vmatprep.subr.mxu0 0.0
  %1112 = vmatpush1.msra.mxu0 0.0
  %1113 = vmatprep.subr.mxu0 0.0
  %1114 = vmatpush1.msra.mxu0 0.0
  %1115 = vmatprep.subr.mxu0 0.0
  %1116 = vmatpush1.msra.mxu0 0.0
  %1117 = vmatprep.subr.mxu0 0.0
  %1118 = vmatpush1.msra.mxu0 0.0
  %1119 = vmatprep.subr.mxu0 0.0
  %1120 = vmatpush1.msra.mxu0 0.0
  %1121 = vmatprep.subr.mxu0 0.0
  %1122 = vmatpush1.msra.mxu0 0.0
  %1123 = vmatprep.subr.mxu0 0.0
  %1124 = vmatpush1.msra.mxu0 0.0
  %1125 = vmatprep.subr.mxu0 0.0
  %1126 = vmatpush1.msra.mxu0 0.0
  %1127 = vmatprep.subr.mxu0 0.0
  %1128 = vmatpush1.msra.mxu0 0.0
  %1129 = vmatprep.subr.mxu0 0.0
  %1130 = vmatpush1.msra.mxu0 0.0
  %1131 = vmatprep.subr.mxu0 0.0
  %1132 = vmatpush1.msra.mxu0 0.0
  %1133 = vmatprep.mubr.f32.mxu0 0.0
  %v1134 = vand.u32 %v46, 4294901760
  %1135 = vmatmul.mubr.f32.gmra.mrb[0].mxu0 %v1134
  %v1136 = vpop.f32.mrb[0].mxu0
  %v1137 = vadd.f32 %v1032, %v1136
  %v1138 = vpop.f32.mrb[0].mxu0
  %v1139 = vadd.f32 %v1034, %v1138
  %1140 = vmatprep.mubr.f32.mxu0 0.0
  %v1141 = vand.u32 %v49, 4294901760
  %1142 = vmatmul.mubr.f32.gmra.mrb[0].mxu0 %v1141
  %v1143 = vpop.f32.mrb[0].mxu0
  %v1144 = vadd.f32 %v1041, %v1143
  %v1145 = vpop.f32.mrb[0].mxu0
  %v1146 = vadd.f32 %v1043, %v1145
  %1147 = vdwg.mxu0
  %v1148 = vand.u32 %v19, 4294901760
  %1149 = vmatprep.subr.mxu0 %v1148
  %v1150 = vand.u32 %v18, 4294901760
  %1151 = vmatpush1.msra.mxu0 %v1150
  %v1152 = vand.u32 %v23, 4294901760
  %1153 = vmatprep.subr.mxu0 %v1152
  %v1154 = vand.u32 %v22, 4294901760
  %1155 = vmatpush1.msra.mxu0 %v1154
  %v1156 = vand.u32 %v27, 4294901760
  %1157 = vmatprep.subr.mxu0 %v1156
  %v1158 = vand.u32 %v26, 4294901760
  %1159 = vmatpush1.msra.mxu0 %v1158
  %v1160 = vand.u32 %v31, 4294901760
  %1161 = vmatprep.subr.mxu0 %v1160
  %v1162 = vand.u32 %v30, 4294901760
  %1163 = vmatpush1.msra.mxu0 %v1162
  %1164 = vmatprep.subr.mxu0 0.0
  %1165 = vmatpush1.msra.mxu0 0.0
  %1166 = vmatprep.subr.mxu0 0.0
  %1167 = vmatpush1.msra.mxu0 0.0
  %1168 = vmatprep.subr.mxu0 0.0
  %1169 = vmatpush1.msra.mxu0 0.0
  %1170 = vmatprep.subr.mxu0 0.0
  %1171 = vmatpush1.msra.mxu0 0.0
  %1172 = vmatprep.subr.mxu0 0.0
  %1173 = vmatpush1.msra.mxu0 0.0
  %1174 = vmatprep.subr.mxu0 0.0
  %1175 = vmatpush1.msra.mxu0 0.0
  %1176 = vmatprep.subr.mxu0 0.0
  %1177 = vmatpush1.msra.mxu0 0.0
  %1178 = vmatprep.subr.mxu0 0.0
  %1179 = vmatpush1.msra.mxu0 0.0
  %1180 = vmatprep.subr.mxu0 0.0
  %1181 = vmatpush1.msra.mxu0 0.0
  %1182 = vmatprep.subr.mxu0 0.0
  %1183 = vmatpush1.msra.mxu0 0.0
  %1184 = vmatprep.subr.mxu0 0.0
  %1185 = vmatpush1.msra.mxu0 0.0
  %1186 = vmatprep.subr.mxu0 0.0
  %1187 = vmatpush1.msra.mxu0 0.0
  %1188 = vmatprep.subr.mxu0 0.0
  %1189 = vmatpush1.msra.mxu0 0.0
  %1190 = vmatprep.subr.mxu0 0.0
  %1191 = vmatpush1.msra.mxu0 0.0
  %1192 = vmatprep.subr.mxu0 0.0
  %1193 = vmatpush1.msra.mxu0 0.0
  %1194 = vmatprep.subr.mxu0 0.0
  %1195 = vmatpush1.msra.mxu0 0.0
  %1196 = vmatprep.subr.mxu0 0.0
  %1197 = vmatpush1.msra.mxu0 0.0
  %1198 = vmatprep.subr.mxu0 0.0
  %1199 = vmatpush1.msra.mxu0 0.0
  %1200 = vmatprep.subr.mxu0 0.0
  %1201 = vmatpush1.msra.mxu0 0.0
  %1202 = vmatprep.subr.mxu0 0.0
  %1203 = vmatpush1.msra.mxu0 0.0
  %1204 = vmatprep.subr.mxu0 0.0
  %1205 = vmatpush1.msra.mxu0 0.0
  %1206 = vmatprep.subr.mxu0 0.0
  %1207 = vmatpush1.msra.mxu0 0.0
  %1208 = vmatprep.subr.mxu0 0.0
  %1209 = vmatpush1.msra.mxu0 0.0
  %1210 = vmatprep.subr.mxu0 0.0
  %1211 = vmatpush1.msra.mxu0 0.0
  %1212 = vmatprep.subr.mxu0 0.0
  %1213 = vmatpush1.msra.mxu0 0.0
  %1214 = vmatprep.subr.mxu0 0.0
  %1215 = vmatpush1.msra.mxu0 0.0
  %1216 = vmatprep.subr.mxu0 0.0
  %1217 = vmatpush1.msra.mxu0 0.0
  %1218 = vmatprep.subr.mxu0 0.0
  %1219 = vmatpush1.msra.mxu0 0.0
  %1220 = vmatprep.mubr.f32.mxu0 0.0
  %v1221 = vand.u32 %v46, 4294901760
  %1222 = vmatmul.mubr.f32.gmra.mrb[0].mxu0 %v1221
  %v1223 = vpop.f32.mrb[0].mxu0
  %v1224 = vadd.f32 %v1137, %v1223
  %v1225 = vpop.f32.mrb[0].mxu0
  %v1226 = vadd.f32 %v1139, %v1225
  %1227 = vmatprep.mubr.f32.mxu0 0.0
  %v1228 = vand.u32 %v49, 4294901760
  %1229 = vmatmul.mubr.f32.gmra.mrb[0].mxu0 %v1228
  %v1230 = vpop.f32.mrb[0].mxu0
  %v1231 = vadd.f32 %v1144, %v1230
  %v1232 = vpop.f32.mrb[0].mxu0
  %v1233 = vadd.f32 %v1146, %v1232
  %1234 = vdwg.mxu0
  %v1235 = vtanh.pop %v632
  %v1236 = vtanh.pop %v634
  %v1237 = vtanh.pop %v1224
  %v1238 = vtanh.pop %v1226
  %v1239 = vtanh.pop %v639
  %v1240 = vtanh.pop %v641
  %v1241 = vtanh.pop %v1231
  %v1242 = vtanh.pop %v1233
  %1243 = vst [vmem:[%s3] sm:$0xff] %v1235
  %1244 = vst [vmem:[%s3 + $0x8] sm:$0xff] %v1236
  %1245 = vst [vmem:[%s3 + $0x10] sm:$0xff] %v1237
  %1246 = vst [vmem:[%s3 + $0x18] sm:$0xff] %v1238
  %1247 = vst [vmem:[%s3 + $0x20] sm:$0xff] %v1239
  %1248 = vst [vmem:[%s3 + $0x28] sm:$0xff] %v1240
  %1249 = vst [vmem:[%s3 + $0x30] sm:$0xff] %v1241
  %1250 = vst [vmem:[%s3 + $0x38] sm:$0xff] %v1242
  // Predicated region
  $region14: #{conv_transpose_tanh.1} parent=0 // pred_check
    _
  $region15: #{conv_transpose_tanh.1} parent=0 // pred_check_branch
    %1252 = sbr.rel (0) target = $region17
  $region16: #{conv_transpose_tanh.1} parent=0 // pred_region
    _
  $region17: #{conv_transpose_tanh.1} parent=0 // pred_fallthru
    _
  // Predicated region
  $region18: #{conv_transpose_tanh.1} parent=0 // pred_check
    _
  $region19: #{conv_transpose_tanh.1} parent=0 // pred_check_branch
    %1254 = sbr.rel (0) target = $region21
  $region20: #{conv_transpose_tanh.1} parent=0 // pred_region
    _
  $region21: #{conv_transpose_tanh.1} parent=0 // pred_fallthru
    _

</llo_original>
